<compile_context>
chip_gen: v5e
topology: v5e:2x2
jax: 0.10.0
libtpu: 0.0.40
codegen_flags: <defaults>
</compile_context>

<pallas_src>
import functools

import jax
import jax.numpy as jnp
import numpy as np
from jax.experimental import pallas as pl
from jax.experimental.pallas import tpu as pltpu

L = [44 * 6, 560, 256, 128, 10]   # 264 -> 560 -> 256 -> 128 -> 10
OUT_PAD = 128                     # lane-dense padded width of final layer
SMALL_B = 128                     # below this, use the no-grid VMEM path
TM = 512                          # max batch-tile rows per grid step


def _round_up(n, m):
    return -(-n // m) * m


def _mlp_kernel(x_ref,
                w0_ref, b0_ref,
                w1_ref, b1_ref,
                w2_ref, b2_ref,
                w3_ref, b3_ref,
                out_ref):
    """One (rows, 264) batch tile through the full 4-layer MLP.

    Weights are bf16 (MXU fast path), accumulation is f32
    (preferred_element_type), bias-add / ReLU stay f32, activations are
    re-cast to bf16 only as the next MXU operand.  Final layer is padded to
    128 lanes so the output store is lane-dense.
    """
    h = x_ref[...].astype(jnp.bfloat16)

    h = jnp.dot(h, w0_ref[...], preferred_element_type=jnp.float32) + b0_ref[...]
    h = jnp.maximum(h, 0.0).astype(jnp.bfloat16)

    h = jnp.dot(h, w1_ref[...], preferred_element_type=jnp.float32) + b1_ref[...]
    h = jnp.maximum(h, 0.0).astype(jnp.bfloat16)

    h = jnp.dot(h, w2_ref[...], preferred_element_type=jnp.float32) + b2_ref[...]
    h = jnp.maximum(h, 0.0).astype(jnp.bfloat16)

    h = jnp.dot(h, w3_ref[...], preferred_element_type=jnp.float32) + b3_ref[...]
    out_ref[...] = h.astype(out_ref.dtype)


def _prep_params(params):
    """Cast weights to bf16; keep biases f32; pad last layer to 128 lanes."""
    prepped = []
    for i, (w, b) in enumerate(params):
        w = w.astype(jnp.bfloat16)
        b = b.astype(jnp.float32).reshape(1, -1)
        if i == 3:
            w = jnp.pad(w, ((0, 0), (0, OUT_PAD - L[4])))
            b = jnp.pad(b, ((0, 0), (0, OUT_PAD - L[4])))
        prepped.append((w, b))
    return prepped


def mlp_pallas(x2d, params):
    """Runs the 4-layer MLP (264->560->256->128->10) in one Pallas kernel."""
    B = x2d.shape[0]
    x2d = x2d.astype(jnp.float32)
    prepped = _prep_params(params)
    flat = []
    for (w, b) in prepped:
        flat += [w, b]

    if B <= SMALL_B:
        # Tiny batch: launch/overhead bound.  No grid, no index_maps — every
        # operand is copied whole into VMEM and the kernel runs once.
        b_pad = max(8, _round_up(B, 8))
        xp = jnp.pad(x2d, ((0, b_pad - B), (0, 0))) if b_pad != B else x2d
        vmem = pl.BlockSpec(memory_space=pltpu.MemorySpace.VMEM)
        out = pl.pallas_call(
            _mlp_kernel,
            out_shape=jax.ShapeDtypeStruct((b_pad, OUT_PAD), jnp.float32),
            in_specs=[vmem] * (1 + len(flat)),
            out_specs=vmem,
        )(xp, *flat)
        return out[:B, :L[4]]

    # Batch-tiled streaming path: x / out tiled along batch (double-buffered
    # by BlockSpec pipelining), weights + biases VMEM-resident across steps
    # via constant index_map.  At tm=512 the working set (activations + bf16
    # weights + double-buffered x/out tiles) is a few MB, well inside the
    # default scoped-VMEM budget on v5e/v6e/v7x, so no vmem_limit_bytes
    # override is needed.
    tm = min(TM, _round_up(B, 8))
    n_tiles = pl.cdiv(B, tm)
    b_pad = n_tiles * tm
    xp = jnp.pad(x2d, ((0, b_pad - B), (0, 0))) if b_pad != B else x2d

    def const_spec(shape):
        return pl.BlockSpec(shape, lambda i: (0, 0))

    in_specs = [pl.BlockSpec((tm, L[0]), lambda i: (i, 0))]
    for (w, b) in prepped:
        in_specs += [const_spec(w.shape), const_spec(b.shape)]

    out = pl.pallas_call(
        _mlp_kernel,
        out_shape=jax.ShapeDtypeStruct((b_pad, OUT_PAD), jnp.float32),
        grid=(n_tiles,),
        in_specs=in_specs,
        out_specs=pl.BlockSpec((tm, OUT_PAD), lambda i: (i, 0)),
        compiler_params=pltpu.CompilerParams(
            dimension_semantics=("parallel",)),   # 2 TCs on v7x; no-op on v5e/v6e
    )(xp, *flat)
    return out[:B, :L[4]]


def init_params(key):
    """Deterministic PyTorch-style init: U(-1/sqrt(fan_in), 1/sqrt(fan_in)), f32."""
    params = []
    for i in range(4):
        fan_in, fan_out = L[i], L[i + 1]
        key, kw, kb = jax.random.split(key, 3)
        bound = 1.0 / (fan_in ** 0.5)
        w = jax.random.uniform(kw, (fan_in, fan_out), jnp.float32, -bound, bound)
        b = jax.random.uniform(kb, (1, fan_out), jnp.float32, -bound, bound)
        params.append((w, b))
    return params


def mlp_ref(x2d, params):
    """Pure-JAX f32 reference of the MLP (for correctness checking only)."""
    h = x2d.astype(jnp.float32)
    for i, (w, b) in enumerate(params):
        h = h @ w + b.reshape(1, -1)
        if i < 3:
            h = jnp.maximum(h, 0.0)
    return h


@jax.jit
def dnn_child_forward(x, params):
    """Matches DNN_child.forward: runs the MLP (result discarded by the
    reference) and returns the original input x unchanged."""
    # TODO(synk): the reference's `print(x.size())` is a host-side print with
    # no device compute; intentionally not reproduced inside the kernel.
    x2d = x.reshape(-1, L[0])                 # x.view(-1, l[0])
    mlp_out = mlp_pallas(x2d, params)         # fc0..fc3 + relu hot path (Pallas)
    return x, mlp_out                         # module output is x; mlp_out only for blocking/verification


if __name__ == "__main__":
    key = jax.random.PRNGKey(0)
    key, kx, kx2 = jax.random.split(key, 3)
    params = init_params(key)

    # Small input consistent with the module: 4 "samples" of shape (6, 44)
    # -> flattens to (4, 264).  Exercises the tiny-batch (no-grid) path.
    x = jax.random.normal(kx, (4, 6, 44), dtype=jnp.float32)
    out_x, mlp_out = dnn_child_forward(x, params)
    jax.block_until_ready(out_x)
    jax.block_until_ready(mlp_out)

    assert out_x.shape == x.shape
    assert mlp_out.shape == (4, L[4])
    assert bool(jnp.all(out_x == x))
    np.testing.assert_allclose(
        np.asarray(mlp_out), np.asarray(mlp_ref(x.reshape(-1, L[0]), params)),
        rtol=5e-2, atol=5e-2)

    # Larger batch exercises the batch-tiled (grid) path with resident weights.
    xl = jax.random.normal(kx2, (1024, L[0]), dtype=jnp.float32)
    out_l = jax.jit(mlp_pallas)(xl, params)
    jax.block_until_ready(out_l)
    assert out_l.shape == (1024, L[4])
    np.testing.assert_allclose(
        np.asarray(out_l), np.asarray(mlp_ref(xl, params)),
        rtol=5e-2, atol=5e-2)

    print("KERNEL_OK")
</pallas_src>

<mosaic_0001>
module attributes {stable_mosaic.version = 11 : i64} {
  func.func @_mlp_kernel(%arg0: memref<8x264xf32, #tpu.memory_space<vmem>>, %arg1: memref<264x560xbf16, #tpu.memory_space<vmem>>, %arg2: memref<1x560xf32, #tpu.memory_space<vmem>>, %arg3: memref<560x256xbf16, #tpu.memory_space<vmem>>, %arg4: memref<1x256xf32, #tpu.memory_space<vmem>>, %arg5: memref<256x128xbf16, #tpu.memory_space<vmem>>, %arg6: memref<1x128xf32, #tpu.memory_space<vmem>>, %arg7: memref<128x128xbf16, #tpu.memory_space<vmem>>, %arg8: memref<1x128xf32, #tpu.memory_space<vmem>>, %arg9: memref<8x128xf32, #tpu.memory_space<vmem>>) attributes {dimension_semantics = [], scalar_prefetch = 0 : i64, scratch_operands = 0 : i64, tpu.core_type = #tpu.core_type<tc>} {
    %c0 = arith.constant 0 : index
    %c0_0 = arith.constant 0 : index
    %0 = vector.load %arg0[%c0, %c0_0] : memref<8x264xf32, #tpu.memory_space<vmem>>, vector<8x264xf32>
    %1 = arith.truncf %0 : vector<8x264xf32> to vector<8x264xbf16>
    %c0_1 = arith.constant 0 : index
    %c0_2 = arith.constant 0 : index
    %2 = vector.load %arg1[%c0_1, %c0_2] : memref<264x560xbf16, #tpu.memory_space<vmem>>, vector<264x560xbf16>
    %cst = arith.constant dense<0.000000e+00> : vector<8x560xf32>
    %3 = tpu.matmul %1, %2, %cst {dimension_numbers = #tpu.dot_dimension_numbers<[1], [0], [0], [1], [0, 0, 1, 1], [], []>} : vector<8x264xbf16>, vector<264x560xbf16>, vector<8x560xf32> -> vector<8x560xf32>
    %c0_3 = arith.constant 0 : index
    %c0_4 = arith.constant 0 : index
    %4 = vector.load %arg2[%c0_3, %c0_4] : memref<1x560xf32, #tpu.memory_space<vmem>>, vector<1x560xf32>
    %5 = vector.broadcast %4 : vector<1x560xf32> to vector<8x560xf32>
    %6 = arith.addf %3, %5 : vector<8x560xf32>
    %cst_5 = arith.constant 0.000000e+00 : f32
    %7 = vector.broadcast %cst_5 : f32 to vector<8x560xf32>
    %8 = arith.maximumf %6, %7 : vector<8x560xf32>
    %9 = arith.truncf %8 : vector<8x560xf32> to vector<8x560xbf16>
    %c0_6 = arith.constant 0 : index
    %c0_7 = arith.constant 0 : index
    %10 = vector.load %arg3[%c0_6, %c0_7] : memref<560x256xbf16, #tpu.memory_space<vmem>>, vector<560x256xbf16>
    %cst_8 = arith.constant dense<0.000000e+00> : vector<8x256xf32>
    %11 = tpu.matmul %9, %10, %cst_8 {dimension_numbers = #tpu.dot_dimension_numbers<[1], [0], [0], [1], [0, 0, 1, 1], [], []>} : vector<8x560xbf16>, vector<560x256xbf16>, vector<8x256xf32> -> vector<8x256xf32>
    %c0_9 = arith.constant 0 : index
    %c0_10 = arith.constant 0 : index
    %12 = vector.load %arg4[%c0_9, %c0_10] : memref<1x256xf32, #tpu.memory_space<vmem>>, vector<1x256xf32>
    %13 = vector.broadcast %12 : vector<1x256xf32> to vector<8x256xf32>
    %14 = arith.addf %11, %13 : vector<8x256xf32>
    %cst_11 = arith.constant 0.000000e+00 : f32
    %15 = vector.broadcast %cst_11 : f32 to vector<8x256xf32>
    %16 = arith.maximumf %14, %15 : vector<8x256xf32>
    %17 = arith.truncf %16 : vector<8x256xf32> to vector<8x256xbf16>
    %c0_12 = arith.constant 0 : index
    %c0_13 = arith.constant 0 : index
    %18 = vector.load %arg5[%c0_12, %c0_13] : memref<256x128xbf16, #tpu.memory_space<vmem>>, vector<256x128xbf16>
    %cst_14 = arith.constant dense<0.000000e+00> : vector<8x128xf32>
    %19 = tpu.matmul %17, %18, %cst_14 {dimension_numbers = #tpu.dot_dimension_numbers<[1], [0], [0], [1], [0, 0, 1, 1], [], []>} : vector<8x256xbf16>, vector<256x128xbf16>, vector<8x128xf32> -> vector<8x128xf32>
    %c0_15 = arith.constant 0 : index
    %c0_16 = arith.constant 0 : index
    %20 = vector.load %arg6[%c0_15, %c0_16] : memref<1x128xf32, #tpu.memory_space<vmem>>, vector<1x128xf32>
    %21 = vector.broadcast %20 : vector<1x128xf32> to vector<8x128xf32>
    %22 = arith.addf %19, %21 : vector<8x128xf32>
    %cst_17 = arith.constant 0.000000e+00 : f32
    %23 = vector.broadcast %cst_17 : f32 to vector<8x128xf32>
    %24 = arith.maximumf %22, %23 : vector<8x128xf32>
    %25 = arith.truncf %24 : vector<8x128xf32> to vector<8x128xbf16>
    %c0_18 = arith.constant 0 : index
    %c0_19 = arith.constant 0 : index
    %26 = vector.load %arg7[%c0_18, %c0_19] : memref<128x128xbf16, #tpu.memory_space<vmem>>, vector<128x128xbf16>
    %cst_20 = arith.constant dense<0.000000e+00> : vector<8x128xf32>
    %27 = tpu.matmul %25, %26, %cst_20 {dimension_numbers = #tpu.dot_dimension_numbers<[1], [0], [0], [1], [0, 0, 1, 1], [], []>} : vector<8x128xbf16>, vector<128x128xbf16>, vector<8x128xf32> -> vector<8x128xf32>
    %c0_21 = arith.constant 0 : index
    %c0_22 = arith.constant 0 : index
    %28 = vector.load %arg8[%c0_21, %c0_22] : memref<1x128xf32, #tpu.memory_space<vmem>>, vector<1x128xf32>
    %29 = vector.broadcast %28 : vector<1x128xf32> to vector<8x128xf32>
    %30 = arith.addf %27, %29 : vector<8x128xf32>
    %c0_23 = arith.constant 0 : index
    %c0_24 = arith.constant 0 : index
    %31 = vector.load %arg9[%c0_23, %c0_24] : memref<8x128xf32, #tpu.memory_space<vmem>>, vector<8x128xf32>
    tpu.vector_store %arg9[%c0_23, %c0_24], %30 {strides = array<i32>} : memref<8x128xf32, #tpu.memory_space<vmem>>, vector<8x128xf32>,
    return
  }
}

</mosaic_0001>

<llo_original>
// kernel: dnn_child_forward.1
$region0: #{dnn_child_forward.1}
  #allocation0 [shape = 'u32[]', space=smem, size = 0x4, offset = 0x4, fixed_abs, tag = 'smem constant byte address 0x4 - core index']
  #allocation1 [shape = 'u32[72,128]{1,0:T(1,128)}', space=vmem, size = 0x9000, scoped, tag = 'internal scratch']
  %s0 = inlined_call_operand.vmem [shape: f32[8,264], index: 0, kind: input, shape index: {}]
  %s1 = inlined_call_operand.vmem [shape: bf16[264,560], index: 1, kind: input, shape index: {}]
  %s2 = inlined_call_operand.vmem [shape: f32[1,560], index: 2, kind: input, shape index: {}]
  %s3 = inlined_call_operand.vmem [shape: bf16[560,256], index: 3, kind: input, shape index: {}]
  %s4 = inlined_call_operand.vmem [shape: f32[1,256], index: 4, kind: input, shape index: {}]
  %s5 = inlined_call_operand.vmem [shape: bf16[256,128], index: 5, kind: input, shape index: {}]
  %s6 = inlined_call_operand.vmem [shape: f32[1,128], index: 6, kind: input, shape index: {}]
  %s7 = inlined_call_operand.vmem [shape: bf16[128,128], index: 7, kind: input, shape index: {}]
  %s8 = inlined_call_operand.vmem [shape: f32[1,128], index: 8, kind: input, shape index: {}]
  %s9 = inlined_call_operand.vmem [shape: f32[8,128], index: 9, kind: output, shape index: {}]
  %s10 = sld [smem:[#allocation0]]
  $region46: #{dnn_child_forward.1} parent=0
    _
  %s12 = ssub.s32 1, %s10
  %s13 = scalar_select 0, %s12, %s10
  // Predicated region
  $region2: #{dnn_child_forward.1} parent=0 // pred_check
    _
  $region3: #{dnn_child_forward.1} parent=0 // pred_check_branch
    %15 = sbr.rel (0) target = $region5
  $region4: #{dnn_child_forward.1} parent=0 // pred_region
    _
  $region5: #{dnn_child_forward.1} parent=0 // pred_fallthru
    _
  // Predicated region
  $region6: #{dnn_child_forward.1} parent=0 // pred_check
    _
  $region7: #{dnn_child_forward.1} parent=0 // pred_check_branch
    %17 = sbr.rel (0) target = $region9
  $region8: #{dnn_child_forward.1} parent=0 // pred_region
    _
  $region9: #{dnn_child_forward.1} parent=0 // pred_fallthru
    _
  // Predicated region
  $region10: #{dnn_child_forward.1} parent=0 // pred_check
    _
  $region11: #{dnn_child_forward.1} parent=0 // pred_check_branch
    %19 = sbr.rel (0) target = $region13
  $region12: #{dnn_child_forward.1} parent=0 // pred_region
    _
  $region13: #{dnn_child_forward.1} parent=0 // pred_fallthru
    _
  // Predicated region
  $region14: #{dnn_child_forward.1} parent=0 // pred_check
    _
  $region15: #{dnn_child_forward.1} parent=0 // pred_check_branch
    %21 = sbr.rel (0) target = $region17
  $region16: #{dnn_child_forward.1} parent=0 // pred_region
    _
  $region17: #{dnn_child_forward.1} parent=0 // pred_fallthru
    _
  // Predicated region
  $region18: #{dnn_child_forward.1} parent=0 // pred_check
    _
  $region19: #{dnn_child_forward.1} parent=0 // pred_check_branch
    %23 = sbr.rel (0) target = $region21
  $region20: #{dnn_child_forward.1} parent=0 // pred_region
    _
  $region21: #{dnn_child_forward.1} parent=0 // pred_fallthru
    _
  // Predicated region
  $region22: #{dnn_child_forward.1} parent=0 // pred_check
    _
  $region23: #{dnn_child_forward.1} parent=0 // pred_check_branch
    %25 = sbr.rel (0) target = $region25
  $region24: #{dnn_child_forward.1} parent=0 // pred_region
    _
  $region25: #{dnn_child_forward.1} parent=0 // pred_fallthru
    _
  // Predicated region
  $region26: #{dnn_child_forward.1} parent=0 // pred_check
    _
  $region27: #{dnn_child_forward.1} parent=0 // pred_check_branch
    %27 = sbr.rel (0) target = $region29
  $region28: #{dnn_child_forward.1} parent=0 // pred_region
    _
  $region29: #{dnn_child_forward.1} parent=0 // pred_fallthru
    _
  // Predicated region
  $region30: #{dnn_child_forward.1} parent=0 // pred_check
    _
  $region31: #{dnn_child_forward.1} parent=0 // pred_check_branch
    %29 = sbr.rel (0) target = $region33
  $region32: #{dnn_child_forward.1} parent=0 // pred_region
    _
  $region33: #{dnn_child_forward.1} parent=0 // pred_fallthru
    _
  // Predicated region
  $region34: #{dnn_child_forward.1} parent=0 // pred_check
    _
  $region35: #{dnn_child_forward.1} parent=0 // pred_check_branch
    %31 = sbr.rel (0) target = $region37
  $region36: #{dnn_child_forward.1} parent=0 // pred_region
    _
  $region37: #{dnn_child_forward.1} parent=0 // pred_fallthru
    _
  %v33 = vld [vmem:[%s0] sm:$0xff]
  %v34 = vld [vmem:[%s0 + $0x8] sm:$0xff]
  %v35 = vld [vmem:[%s0 + $0x10] sm:$0xff]
  %v36 = vpack.c.bf16 %v33, %v33
  %v37 = vpack.c.bf16 %v34, %v34
  %v38 = vpack.c.bf16 %v35, %v35
  %v39 = vld [vmem:[%s1] sm:$0xff]
  %v40 = vld [vmem:[%s1 + $0x8] sm:$0xff]
  %v41 = vld [vmem:[%s1 + $0x10] sm:$0xf]
  %v42 = vld [vmem:[%s1 + $0x14] sm:$0xff]
  %v43 = vld [vmem:[%s1 + $0x1c] sm:$0xff]
  %v44 = vld [vmem:[%s1 + $0x24] sm:$0xf]
  %v45 = vld [vmem:[%s1 + $0x28] sm:$0xff]
  %v46 = vld [vmem:[%s1 + $0x30] sm:$0xff]
  %v47 = vld [vmem:[%s1 + $0x38] sm:$0xf]
  %v48 = vld [vmem:[%s1 + $0x3c] sm:$0xff]
  %v49 = vld [vmem:[%s1 + $0x44] sm:$0xff]
  %v50 = vld [vmem:[%s1 + $0x4c] sm:$0xf]
  %v51 = vld [vmem:[%s1 + $0x50] sm:$0xff]
  %v52 = vld [vmem:[%s1 + $0x58] sm:$0xff]
  %v53 = vld [vmem:[%s1 + $0x60] sm:$0xf]
  %v54 = vld [vmem:[%s1 + $0x64] sm:$0xff]
  %v55 = vld [vmem:[%s1 + $0x6c] sm:$0xff]
  %v56 = vld [vmem:[%s1 + $0x74] sm:$0xf]
  %v57 = vld [vmem:[%s1 + $0x78] sm:$0xff]
  %v58 = vld [vmem:[%s1 + $0x80] sm:$0xff]
  %v59 = vld [vmem:[%s1 + $0x88] sm:$0xf]
  %v60 = vld [vmem:[%s1 + $0x8c] sm:$0xff]
  %v61 = vld [vmem:[%s1 + $0x94] sm:$0xff]
  %v62 = vld [vmem:[%s1 + $0x9c] sm:$0xf]
  %v63 = vld [vmem:[%s1 + $0xa0] sm:$0xff]
  %v64 = vld [vmem:[%s1 + $0xa8] sm:$0xff]
  %v65 = vld [vmem:[%s1 + $0xb0] sm:$0xf]
  %v66 = vld [vmem:[%s1 + $0xb4] sm:$0xff]
  %v67 = vld [vmem:[%s1 + $0xbc] sm:$0xff]
  %v68 = vld [vmem:[%s1 + $0xc4] sm:$0xf]
  %v69 = vld [vmem:[%s1 + $0xc8] sm:$0xff]
  %v70 = vld [vmem:[%s1 + $0xd0] sm:$0xff]
  %v71 = vld [vmem:[%s1 + $0xd8] sm:$0xf]
  %v72 = vld [vmem:[%s1 + $0xdc] sm:$0xff]
  %v73 = vld [vmem:[%s1 + $0xe4] sm:$0xff]
  %v74 = vld [vmem:[%s1 + $0xec] sm:$0xf]
  %v75 = vld [vmem:[%s1 + $0xf0] sm:$0xff]
  %v76 = vld [vmem:[%s1 + $0xf8] sm:$0xff]
  %v77 = vld [vmem:[%s1 + $0x100] sm:$0xf]
  %v78 = vld [vmem:[%s1 + $0x104] sm:$0xff]
  %v79 = vld [vmem:[%s1 + $0x10c] sm:$0xff]
  %v80 = vld [vmem:[%s1 + $0x114] sm:$0xf]
  %v81 = vld [vmem:[%s1 + $0x118] sm:$0xff]
  %v82 = vld [vmem:[%s1 + $0x120] sm:$0xff]
  %v83 = vld [vmem:[%s1 + $0x128] sm:$0xf]
  %v84 = vld [vmem:[%s1 + $0x12c] sm:$0xff]
  %v85 = vld [vmem:[%s1 + $0x134] sm:$0xff]
  %v86 = vld [vmem:[%s1 + $0x13c] sm:$0xf]
  %v87 = vld [vmem:[%s1 + $0x140] sm:$0xff]
  %v88 = vld [vmem:[%s1 + $0x148] sm:$0xff]
  %v89 = vld [vmem:[%s1 + $0x150] sm:$0xf]
  %v90 = vld [vmem:[%s1 + $0x154] sm:$0xff]
  %v91 = vld [vmem:[%s1 + $0x15c] sm:$0xff]
  %v92 = vld [vmem:[%s1 + $0x164] sm:$0xf]
  %v93 = vld [vmem:[%s1 + $0x168] sm:$0xff]
  %v94 = vld [vmem:[%s1 + $0x170] sm:$0xff]
  %v95 = vld [vmem:[%s1 + $0x178] sm:$0xf]
  %v96 = vld [vmem:[%s1 + $0x17c] sm:$0xff]
  %v97 = vld [vmem:[%s1 + $0x184] sm:$0xff]
  %v98 = vld [vmem:[%s1 + $0x18c] sm:$0xf]
  %v99 = vld [vmem:[%s1 + $0x190] sm:$0xff]
  %v100 = vld [vmem:[%s1 + $0x198] sm:$0xff]
  %v101 = vld [vmem:[%s1 + $0x1a0] sm:$0xf]
  %v102 = vld [vmem:[%s1 + $0x1a4] sm:$0xff]
  %v103 = vld [vmem:[%s1 + $0x1ac] sm:$0xff]
  %v104 = vld [vmem:[%s1 + $0x1b4] sm:$0xf]
  %v105 = vld [vmem:[%s1 + $0x1b8] sm:$0xff]
  %v106 = vld [vmem:[%s1 + $0x1c0] sm:$0xff]
  %v107 = vld [vmem:[%s1 + $0x1c8] sm:$0xf]
  %v108 = vld [vmem:[%s1 + $0x1cc] sm:$0xff]
  %v109 = vld [vmem:[%s1 + $0x1d4] sm:$0xff]
  %v110 = vld [vmem:[%s1 + $0x1dc] sm:$0xf]
  %v111 = vld [vmem:[%s1 + $0x1e0] sm:$0xff]
  %v112 = vld [vmem:[%s1 + $0x1e8] sm:$0xff]
  %v113 = vld [vmem:[%s1 + $0x1f0] sm:$0xf]
  %v114 = vld [vmem:[%s1 + $0x1f4] sm:$0xff]
  %v115 = vld [vmem:[%s1 + $0x1fc] sm:$0xff]
  %v116 = vld [vmem:[%s1 + $0x204] sm:$0xf]
  %v117 = vld [vmem:[%s1 + $0x208] sm:$0xff]
  %v118 = vld [vmem:[%s1 + $0x210] sm:$0xff]
  %v119 = vld [vmem:[%s1 + $0x218] sm:$0xf]
  %v120 = vld [vmem:[%s1 + $0x21c] sm:$0xff]
  %v121 = vld [vmem:[%s1 + $0x224] sm:$0xff]
  %v122 = vld [vmem:[%s1 + $0x22c] sm:$0xf]
  %v123 = vld [vmem:[%s1 + $0x230] sm:$0xff]
  %v124 = vld [vmem:[%s1 + $0x238] sm:$0xff]
  %v125 = vld [vmem:[%s1 + $0x240] sm:$0xf]
  %v126 = vld [vmem:[%s1 + $0x244] sm:$0xff]
  %v127 = vld [vmem:[%s1 + $0x24c] sm:$0xff]
  %v128 = vld [vmem:[%s1 + $0x254] sm:$0xf]
  %v129 = vld [vmem:[%s1 + $0x258] sm:$0xff]
  %v130 = vld [vmem:[%s1 + $0x260] sm:$0xff]
  %v131 = vld [vmem:[%s1 + $0x268] sm:$0xf]
  %v132 = vld [vmem:[%s1 + $0x26c] sm:$0xff]
  %v133 = vld [vmem:[%s1 + $0x274] sm:$0xff]
  %v134 = vld [vmem:[%s1 + $0x27c] sm:$0xf]
  %v135 = vld [vmem:[%s1 + $0x280] sm:$0xff]
  %v136 = vld [vmem:[%s1 + $0x288] sm:$0xff]
  %v137 = vld [vmem:[%s1 + $0x290] sm:$0xf]
  %v138 = vld [vmem:[%s2] sm:$0x1f]
  %v140 = vperm.slane %v138, 0
  %v141 = vperm.slane %v138, 1
  %v142 = vperm.slane %v138, 2
  %v143 = vperm.slane %v138, 3
  %v144 = vperm.slane %v138, 4
  %v249 = vunpack.c.l.b16 %v39
  %v250 = vunpack.c.h.b16 %v39
  %v251 = vunpack.c.l.b16 %v40
  %v252 = vunpack.c.h.b16 %v40
  %v253 = vunpack.c.l.b16 %v41
  %v254 = vunpack.c.l.b16 %v42
  %v255 = vunpack.c.h.b16 %v42
  %v256 = vunpack.c.l.b16 %v43
  %v257 = vunpack.c.h.b16 %v43
  %v258 = vunpack.c.l.b16 %v44
  %v259 = vunpack.c.l.b16 %v45
  %v260 = vunpack.c.h.b16 %v45
  %v261 = vunpack.c.l.b16 %v46
  %v262 = vunpack.c.h.b16 %v46
  %v263 = vunpack.c.l.b16 %v47
  %v264 = vunpack.c.l.b16 %v48
  %v265 = vunpack.c.h.b16 %v48
  %v266 = vunpack.c.l.b16 %v49
  %v267 = vunpack.c.h.b16 %v49
  %v268 = vunpack.c.l.b16 %v50
  %v269 = vunpack.c.l.b16 %v51
  %v270 = vunpack.c.h.b16 %v51
  %v271 = vunpack.c.l.b16 %v52
  %v272 = vunpack.c.h.b16 %v52
  %v273 = vunpack.c.l.b16 %v53
  %v274 = vunpack.c.l.b16 %v54
  %v275 = vunpack.c.h.b16 %v54
  %v276 = vunpack.c.l.b16 %v55
  %v277 = vunpack.c.h.b16 %v55
  %v278 = vunpack.c.l.b16 %v56
  %v279 = vunpack.c.l.b16 %v57
  %v280 = vunpack.c.h.b16 %v57
  %v281 = vunpack.c.l.b16 %v58
  %v282 = vunpack.c.h.b16 %v58
  %v283 = vunpack.c.l.b16 %v59
  %v284 = vunpack.c.l.b16 %v60
  %v285 = vunpack.c.h.b16 %v60
  %v286 = vunpack.c.l.b16 %v61
  %v287 = vunpack.c.h.b16 %v61
  %v288 = vunpack.c.l.b16 %v62
  %v289 = vunpack.c.l.b16 %v63
  %v290 = vunpack.c.h.b16 %v63
  %v291 = vunpack.c.l.b16 %v64
  %v292 = vunpack.c.h.b16 %v64
  %v293 = vunpack.c.l.b16 %v65
  %v294 = vunpack.c.l.b16 %v66
  %v295 = vunpack.c.h.b16 %v66
  %v296 = vunpack.c.l.b16 %v67
  %v297 = vunpack.c.h.b16 %v67
  %v298 = vunpack.c.l.b16 %v68
  %v299 = vunpack.c.l.b16 %v69
  %v300 = vunpack.c.h.b16 %v69
  %v301 = vunpack.c.l.b16 %v70
  %v302 = vunpack.c.h.b16 %v70
  %v303 = vunpack.c.l.b16 %v71
  %v304 = vunpack.c.l.b16 %v72
  %v305 = vunpack.c.h.b16 %v72
  %v306 = vunpack.c.l.b16 %v73
  %v307 = vunpack.c.h.b16 %v73
  %v308 = vunpack.c.l.b16 %v74
  %v309 = vunpack.c.l.b16 %v75
  %v310 = vunpack.c.h.b16 %v75
  %v311 = vunpack.c.l.b16 %v76
  %v312 = vunpack.c.h.b16 %v76
  %v313 = vunpack.c.l.b16 %v77
  %v314 = vunpack.c.l.b16 %v78
  %v315 = vunpack.c.h.b16 %v78
  %v316 = vunpack.c.l.b16 %v79
  %v317 = vunpack.c.h.b16 %v79
  %v318 = vunpack.c.l.b16 %v80
  %v319 = vunpack.c.l.b16 %v81
  %v320 = vunpack.c.h.b16 %v81
  %v321 = vunpack.c.l.b16 %v82
  %v322 = vunpack.c.h.b16 %v82
  %v323 = vunpack.c.l.b16 %v83
  %v324 = vunpack.c.l.b16 %v84
  %v325 = vunpack.c.h.b16 %v84
  %v326 = vunpack.c.l.b16 %v85
  %v327 = vunpack.c.h.b16 %v85
  %v328 = vunpack.c.l.b16 %v86
  %v329 = vunpack.c.l.b16 %v87
  %v330 = vunpack.c.h.b16 %v87
  %v331 = vunpack.c.l.b16 %v88
  %v332 = vunpack.c.h.b16 %v88
  %v333 = vunpack.c.l.b16 %v89
  %v334 = vunpack.c.l.b16 %v90
  %v335 = vunpack.c.h.b16 %v90
  %v336 = vunpack.c.l.b16 %v91
  %v337 = vunpack.c.h.b16 %v91
  %v338 = vunpack.c.l.b16 %v92
  %v339 = vunpack.c.l.b16 %v93
  %v340 = vunpack.c.h.b16 %v93
  %v341 = vunpack.c.l.b16 %v94
  %v342 = vunpack.c.h.b16 %v94
  %v343 = vunpack.c.l.b16 %v95
  %v344 = vunpack.c.l.b16 %v96
  %v345 = vunpack.c.h.b16 %v96
  %v346 = vunpack.c.l.b16 %v97
  %v347 = vunpack.c.h.b16 %v97
  %v348 = vunpack.c.l.b16 %v98
  %v349 = vunpack.c.l.b16 %v99
  %v350 = vunpack.c.h.b16 %v99
  %v351 = vunpack.c.l.b16 %v100
  %v352 = vunpack.c.h.b16 %v100
  %v353 = vunpack.c.l.b16 %v101
  %v354 = vunpack.c.l.b16 %v102
  %v355 = vunpack.c.h.b16 %v102
  %v356 = vunpack.c.l.b16 %v103
  %v357 = vunpack.c.h.b16 %v103
  %v358 = vunpack.c.l.b16 %v104
  %v359 = vunpack.c.l.b16 %v105
  %v360 = vunpack.c.h.b16 %v105
  %v361 = vunpack.c.l.b16 %v106
  %v362 = vunpack.c.h.b16 %v106
  %v363 = vunpack.c.l.b16 %v107
  %v364 = vunpack.c.l.b16 %v108
  %v365 = vunpack.c.h.b16 %v108
  %v366 = vunpack.c.l.b16 %v109
  %v367 = vunpack.c.h.b16 %v109
  %v368 = vunpack.c.l.b16 %v110
  %v369 = vunpack.c.l.b16 %v111
  %v370 = vunpack.c.h.b16 %v111
  %v371 = vunpack.c.l.b16 %v112
  %v372 = vunpack.c.h.b16 %v112
  %v373 = vunpack.c.l.b16 %v113
  %v374 = vunpack.c.l.b16 %v114
  %v375 = vunpack.c.h.b16 %v114
  %v376 = vunpack.c.l.b16 %v115
  %v377 = vunpack.c.h.b16 %v115
  %v378 = vunpack.c.l.b16 %v116
  %v379 = vunpack.c.l.b16 %v117
  %v380 = vunpack.c.h.b16 %v117
  %v381 = vunpack.c.l.b16 %v118
  %v382 = vunpack.c.h.b16 %v118
  %v383 = vunpack.c.l.b16 %v119
  %v384 = vunpack.c.l.b16 %v120
  %v385 = vunpack.c.h.b16 %v120
  %v386 = vunpack.c.l.b16 %v121
  %v387 = vunpack.c.h.b16 %v121
  %v388 = vunpack.c.l.b16 %v122
  %v389 = vunpack.c.l.b16 %v123
  %v390 = vunpack.c.h.b16 %v123
  %v391 = vunpack.c.l.b16 %v124
  %v392 = vunpack.c.h.b16 %v124
  %v393 = vunpack.c.l.b16 %v125
  %v394 = vunpack.c.l.b16 %v126
  %v395 = vunpack.c.h.b16 %v126
  %v396 = vunpack.c.l.b16 %v127
  %v397 = vunpack.c.h.b16 %v127
  %v398 = vunpack.c.l.b16 %v128
  %v399 = vunpack.c.l.b16 %v129
  %v400 = vunpack.c.h.b16 %v129
  %v401 = vunpack.c.l.b16 %v130
  %v402 = vunpack.c.h.b16 %v130
  %v403 = vunpack.c.l.b16 %v131
  %v404 = vunpack.c.l.b16 %v132
  %v405 = vunpack.c.h.b16 %v132
  %v406 = vunpack.c.l.b16 %v133
  %v407 = vunpack.c.h.b16 %v133
  %v408 = vunpack.c.l.b16 %v134
  %v409 = vunpack.c.l.b16 %v135
  %v410 = vunpack.c.h.b16 %v135
  %v411 = vunpack.c.l.b16 %v136
  %v412 = vunpack.c.h.b16 %v136
  %v413 = vunpack.c.l.b16 %v137
  %v414 = vpack.c.b16 %v254, %v249
  %v415 = vpack.c.b16 %v255, %v250
  %v416 = vpack.c.b16 %v256, %v251
  %v417 = vpack.c.b16 %v257, %v252
  %v418 = vpack.c.b16 %v258, %v253
  %v419 = vpack.c.b16 %v264, %v259
  %v420 = vpack.c.b16 %v265, %v260
  %v421 = vpack.c.b16 %v266, %v261
  %v422 = vpack.c.b16 %v267, %v262
  %v423 = vpack.c.b16 %v268, %v263
  %v424 = vpack.c.b16 %v274, %v269
  %v425 = vpack.c.b16 %v275, %v270
  %v426 = vpack.c.b16 %v276, %v271
  %v427 = vpack.c.b16 %v277, %v272
  %v428 = vpack.c.b16 %v278, %v273
  %v429 = vpack.c.b16 %v284, %v279
  %v430 = vpack.c.b16 %v285, %v280
  %v431 = vpack.c.b16 %v286, %v281
  %v432 = vpack.c.b16 %v287, %v282
  %v433 = vpack.c.b16 %v288, %v283
  %v434 = vpack.c.b16 %v294, %v289
  %v435 = vpack.c.b16 %v295, %v290
  %v436 = vpack.c.b16 %v296, %v291
  %v437 = vpack.c.b16 %v297, %v292
  %v438 = vpack.c.b16 %v298, %v293
  %v439 = vpack.c.b16 %v304, %v299
  %v440 = vpack.c.b16 %v305, %v300
  %v441 = vpack.c.b16 %v306, %v301
  %v442 = vpack.c.b16 %v307, %v302
  %v443 = vpack.c.b16 %v308, %v303
  %v444 = vpack.c.b16 %v314, %v309
  %v445 = vpack.c.b16 %v315, %v310
  %v446 = vpack.c.b16 %v316, %v311
  %v447 = vpack.c.b16 %v317, %v312
  %v448 = vpack.c.b16 %v318, %v313
  %v449 = vpack.c.b16 %v324, %v319
  %v450 = vpack.c.b16 %v325, %v320
  %v451 = vpack.c.b16 %v326, %v321
  %v452 = vpack.c.b16 %v327, %v322
  %v453 = vpack.c.b16 %v328, %v323
  %v454 = vpack.c.b16 %v334, %v329
  %v455 = vpack.c.b16 %v335, %v330
  %v456 = vpack.c.b16 %v336, %v331
  %v457 = vpack.c.b16 %v337, %v332
  %v458 = vpack.c.b16 %v338, %v333
  %v459 = vpack.c.b16 %v344, %v339
  %v460 = vpack.c.b16 %v345, %v340
  %v461 = vpack.c.b16 %v346, %v341
  %v462 = vpack.c.b16 %v347, %v342
  %v463 = vpack.c.b16 %v348, %v343
  %v464 = vpack.c.b16 %v354, %v349
  %v465 = vpack.c.b16 %v355, %v350
  %v466 = vpack.c.b16 %v356, %v351
  %v467 = vpack.c.b16 %v357, %v352
  %v468 = vpack.c.b16 %v358, %v353
  %v469 = vpack.c.b16 %v364, %v359
  %v470 = vpack.c.b16 %v365, %v360
  %v471 = vpack.c.b16 %v366, %v361
  %v472 = vpack.c.b16 %v367, %v362
  %v473 = vpack.c.b16 %v368, %v363
  %v474 = vpack.c.b16 %v374, %v369
  %v475 = vpack.c.b16 %v375, %v370
  %v476 = vpack.c.b16 %v376, %v371
  %v477 = vpack.c.b16 %v377, %v372
  %v478 = vpack.c.b16 %v378, %v373
  %v479 = vpack.c.b16 %v384, %v379
  %v480 = vpack.c.b16 %v385, %v380
  %v481 = vpack.c.b16 %v386, %v381
  %v482 = vpack.c.b16 %v387, %v382
  %v483 = vpack.c.b16 %v388, %v383
  %v484 = vpack.c.b16 %v394, %v389
  %v485 = vpack.c.b16 %v395, %v390
  %v486 = vpack.c.b16 %v396, %v391
  %v487 = vpack.c.b16 %v397, %v392
  %v488 = vpack.c.b16 %v398, %v393
  %v489 = vpack.c.b16 %v404, %v399
  %v490 = vpack.c.b16 %v405, %v400
  %v491 = vpack.c.b16 %v406, %v401
  %v492 = vpack.c.b16 %v407, %v402
  %v493 = vpack.c.b16 %v408, %v403
  %v494 = vpack.c.b16 %v409, %v409
  %v495 = vpack.c.b16 %v410, %v410
  %v496 = vpack.c.b16 %v411, %v411
  %v497 = vpack.c.b16 %v412, %v412
  %v498 = vpack.c.b16 %v413, %v413
  %vm579 = vcmask 64512
  %v581 = vsel %vm579, %v38, 0
  %vm583 = vcmask 1043456
  %v585 = vsel %vm583, %v494, 0
  %v588 = vsel %vm583, %v495, 0
  %v591 = vsel %vm583, %v496, 0
  %v594 = vsel %vm583, %v497, 0
  %v597 = vsel %vm583, %v498, 0
  %599 = vmatpush.bf16.msra.mxu0 %v449
  %600 = vmatpush.bf16.msra.mxu0 %v444
  %601 = vmatpush.bf16.msra.mxu0 %v439
  %602 = vmatpush.bf16.msra.mxu0 %v434
  %603 = vmatpush.bf16.msra.mxu0 %v429
  %604 = vmatpush.bf16.msra.mxu0 %v424
  %605 = vmatpush.bf16.msra.mxu0 %v419
  %606 = vmatpush.bf16.msra.mxu0 %v414
  %607 = vmatmul.bf16.gmra.mxu0 %v36
  %v608 = vpop.f32.mrf.mxu0
  %v609 = vadd.f32 %v140, %v608
  %v610 = vpop.f32.mrf.mxu0
  %611 = vdwg.mxu0
  %612 = vmatpush.bf16.msra.mxu0 %v489
  %613 = vmatpush.bf16.msra.mxu0 %v484
  %614 = vmatpush.bf16.msra.mxu0 %v479
  %615 = vmatpush.bf16.msra.mxu0 %v474
  %616 = vmatpush.bf16.msra.mxu0 %v469
  %617 = vmatpush.bf16.msra.mxu0 %v464
  %618 = vmatpush.bf16.msra.mxu0 %v459
  %619 = vmatpush.bf16.msra.mxu0 %v454
  %620 = vmatmul.bf16.gmra.mxu0 %v37
  %v621 = vpop.f32.mrf.mxu0
  %v622 = vadd.f32 %v609, %v621
  %v623 = vpop.f32.mrf.mxu0
  %624 = vdwg.mxu0
  %625 = vmatpush.bf16.msra.mxu0 0
  %626 = vmatpush.bf16.msra.mxu0 0
  %627 = vmatpush.bf16.msra.mxu0 0
  %628 = vmatpush.bf16.msra.mxu0 0
  %629 = vmatpush.bf16.msra.mxu0 0
  %630 = vmatpush.bf16.msra.mxu0 0
  %631 = vmatpush.bf16.msra.mxu0 0
  %632 = vmatpush.bf16.msra.mxu0 %v585
  %633 = vmatmul.bf16.gmra.mxu0 %v581
  %v634 = vpop.f32.mrf.mxu0
  %v635 = vadd.f32 %v622, %v634
  %v636 = vpop.f32.mrf.mxu0
  %637 = vdwg.mxu0
  %638 = vmatpush.bf16.msra.mxu0 %v450
  %639 = vmatpush.bf16.msra.mxu0 %v445
  %640 = vmatpush.bf16.msra.mxu0 %v440
  %641 = vmatpush.bf16.msra.mxu0 %v435
  %642 = vmatpush.bf16.msra.mxu0 %v430
  %643 = vmatpush.bf16.msra.mxu0 %v425
  %644 = vmatpush.bf16.msra.mxu0 %v420
  %645 = vmatpush.bf16.msra.mxu0 %v415
  %646 = vmatmul.bf16.gmra.mxu0 %v36
  %v647 = vpop.f32.mrf.mxu0
  %v648 = vadd.f32 %v141, %v647
  %v649 = vpop.f32.mrf.mxu0
  %650 = vdwg.mxu0
  %651 = vmatpush.bf16.msra.mxu0 %v490
  %652 = vmatpush.bf16.msra.mxu0 %v485
  %653 = vmatpush.bf16.msra.mxu0 %v480
  %654 = vmatpush.bf16.msra.mxu0 %v475
  %655 = vmatpush.bf16.msra.mxu0 %v470
  %656 = vmatpush.bf16.msra.mxu0 %v465
  %657 = vmatpush.bf16.msra.mxu0 %v460
  %658 = vmatpush.bf16.msra.mxu0 %v455
  %659 = vmatmul.bf16.gmra.mxu0 %v37
  %v660 = vpop.f32.mrf.mxu0
  %v661 = vadd.f32 %v648, %v660
  %v662 = vpop.f32.mrf.mxu0
  %663 = vdwg.mxu0
  %664 = vmatpush.bf16.msra.mxu0 0
  %665 = vmatpush.bf16.msra.mxu0 0
  %666 = vmatpush.bf16.msra.mxu0 0
  %667 = vmatpush.bf16.msra.mxu0 0
  %668 = vmatpush.bf16.msra.mxu0 0
  %669 = vmatpush.bf16.msra.mxu0 0
  %670 = vmatpush.bf16.msra.mxu0 0
  %671 = vmatpush.bf16.msra.mxu0 %v588
  %672 = vmatmul.bf16.gmra.mxu0 %v581
  %v673 = vpop.f32.mrf.mxu0
  %v674 = vadd.f32 %v661, %v673
  %v675 = vpop.f32.mrf.mxu0
  %676 = vdwg.mxu0
  %677 = vmatpush.bf16.msra.mxu0 %v451
  %678 = vmatpush.bf16.msra.mxu0 %v446
  %679 = vmatpush.bf16.msra.mxu0 %v441
  %680 = vmatpush.bf16.msra.mxu0 %v436
  %681 = vmatpush.bf16.msra.mxu0 %v431
  %682 = vmatpush.bf16.msra.mxu0 %v426
  %683 = vmatpush.bf16.msra.mxu0 %v421
  %684 = vmatpush.bf16.msra.mxu0 %v416
  %685 = vmatmul.bf16.gmra.mxu0 %v36
  %v686 = vpop.f32.mrf.mxu0
  %v687 = vadd.f32 %v142, %v686
  %v688 = vpop.f32.mrf.mxu0
  %689 = vdwg.mxu0
  %690 = vmatpush.bf16.msra.mxu0 %v491
  %691 = vmatpush.bf16.msra.mxu0 %v486
  %692 = vmatpush.bf16.msra.mxu0 %v481
  %693 = vmatpush.bf16.msra.mxu0 %v476
  %694 = vmatpush.bf16.msra.mxu0 %v471
  %695 = vmatpush.bf16.msra.mxu0 %v466
  %696 = vmatpush.bf16.msra.mxu0 %v461
  %697 = vmatpush.bf16.msra.mxu0 %v456
  %698 = vmatmul.bf16.gmra.mxu0 %v37
  %v699 = vpop.f32.mrf.mxu0
  %v700 = vadd.f32 %v687, %v699
  %v701 = vpop.f32.mrf.mxu0
  %702 = vdwg.mxu0
  %703 = vmatpush.bf16.msra.mxu0 0
  %704 = vmatpush.bf16.msra.mxu0 0
  %705 = vmatpush.bf16.msra.mxu0 0
  %706 = vmatpush.bf16.msra.mxu0 0
  %707 = vmatpush.bf16.msra.mxu0 0
  %708 = vmatpush.bf16.msra.mxu0 0
  %709 = vmatpush.bf16.msra.mxu0 0
  %710 = vmatpush.bf16.msra.mxu0 %v591
  %711 = vmatmul.bf16.gmra.mxu0 %v581
  %v712 = vpop.f32.mrf.mxu0
  %v713 = vadd.f32 %v700, %v712
  %v714 = vpop.f32.mrf.mxu0
  %715 = vdwg.mxu0
  %716 = vmatpush.bf16.msra.mxu0 %v452
  %717 = vmatpush.bf16.msra.mxu0 %v447
  %718 = vmatpush.bf16.msra.mxu0 %v442
  %719 = vmatpush.bf16.msra.mxu0 %v437
  %720 = vmatpush.bf16.msra.mxu0 %v432
  %721 = vmatpush.bf16.msra.mxu0 %v427
  %722 = vmatpush.bf16.msra.mxu0 %v422
  %723 = vmatpush.bf16.msra.mxu0 %v417
  %724 = vmatmul.bf16.gmra.mxu0 %v36
  %v725 = vpop.f32.mrf.mxu0
  %v726 = vadd.f32 %v143, %v725
  %v727 = vpop.f32.mrf.mxu0
  %728 = vdwg.mxu0
  %729 = vmatpush.bf16.msra.mxu0 %v492
  %730 = vmatpush.bf16.msra.mxu0 %v487
  %731 = vmatpush.bf16.msra.mxu0 %v482
  %732 = vmatpush.bf16.msra.mxu0 %v477
  %733 = vmatpush.bf16.msra.mxu0 %v472
  %734 = vmatpush.bf16.msra.mxu0 %v467
  %735 = vmatpush.bf16.msra.mxu0 %v462
  %736 = vmatpush.bf16.msra.mxu0 %v457
  %737 = vmatmul.bf16.gmra.mxu0 %v37
  %v738 = vpop.f32.mrf.mxu0
  %v739 = vadd.f32 %v726, %v738
  %v740 = vpop.f32.mrf.mxu0
  %741 = vdwg.mxu0
  %742 = vmatpush.bf16.msra.mxu0 0
  %743 = vmatpush.bf16.msra.mxu0 0
  %744 = vmatpush.bf16.msra.mxu0 0
  %745 = vmatpush.bf16.msra.mxu0 0
  %746 = vmatpush.bf16.msra.mxu0 0
  %747 = vmatpush.bf16.msra.mxu0 0
  %748 = vmatpush.bf16.msra.mxu0 0
  %749 = vmatpush.bf16.msra.mxu0 %v594
  %750 = vmatmul.bf16.gmra.mxu0 %v581
  %v751 = vpop.f32.mrf.mxu0
  %v752 = vadd.f32 %v739, %v751
  %v753 = vpop.f32.mrf.mxu0
  %754 = vdwg.mxu0
  %755 = vmatpush.bf16.msra.mxu0 %v453
  %756 = vmatpush.bf16.msra.mxu0 %v448
  %757 = vmatpush.bf16.msra.mxu0 %v443
  %758 = vmatpush.bf16.msra.mxu0 %v438
  %759 = vmatpush.bf16.msra.mxu0 %v433
  %760 = vmatpush.bf16.msra.mxu0 %v428
  %761 = vmatpush.bf16.msra.mxu0 %v423
  %762 = vmatpush.bf16.msra.mxu0 %v418
  %763 = vmatmul.bf16.gmra.mxu0 %v36
  %v764 = vpop.f32.mrf.mxu0
  %v765 = vadd.f32 %v144, %v764
  %v766 = vpop.f32.mrf.mxu0
  %767 = vdwg.mxu0
  %768 = vmatpush.bf16.msra.mxu0 %v493
  %769 = vmatpush.bf16.msra.mxu0 %v488
  %770 = vmatpush.bf16.msra.mxu0 %v483
  %771 = vmatpush.bf16.msra.mxu0 %v478
  %772 = vmatpush.bf16.msra.mxu0 %v473
  %773 = vmatpush.bf16.msra.mxu0 %v468
  %774 = vmatpush.bf16.msra.mxu0 %v463
  %775 = vmatpush.bf16.msra.mxu0 %v458
  %776 = vmatmul.bf16.gmra.mxu0 %v37
  %v777 = vpop.f32.mrf.mxu0
  %v778 = vadd.f32 %v765, %v777
  %v779 = vpop.f32.mrf.mxu0
  %780 = vdwg.mxu0
  %781 = vmatpush.bf16.msra.mxu0 0
  %782 = vmatpush.bf16.msra.mxu0 0
  %783 = vmatpush.bf16.msra.mxu0 0
  %784 = vmatpush.bf16.msra.mxu0 0
  %785 = vmatpush.bf16.msra.mxu0 0
  %786 = vmatpush.bf16.msra.mxu0 0
  %787 = vmatpush.bf16.msra.mxu0 0
  %788 = vmatpush.bf16.msra.mxu0 %v597
  %789 = vmatmul.bf16.gmra.mxu0 %v581
  %v790 = vpop.f32.mrf.mxu0
  %v791 = vadd.f32 %v778, %v790
  %v792 = vpop.f32.mrf.mxu0
  %793 = vdwg.mxu0
  %v794 = vmax.f32 %v635, 0.0
  %v795 = vmax.f32 %v674, 0.0
  %v796 = vmax.f32 %v713, 0.0
  %v797 = vmax.f32 %v752, 0.0
  %v798 = vmax.f32 %v791, 0.0
  %v799 = vpack.c.bf16 %v794, %v794
  %v800 = vpack.c.bf16 %v795, %v795
  %v801 = vpack.c.bf16 %v796, %v796
  %v802 = vpack.c.bf16 %v797, %v797
  %v803 = vpack.c.bf16 %v798, %v798
  %v804 = vld [vmem:[%s3] sm:$0xff]
  %v805 = vld [vmem:[%s3 + $0x8] sm:$0xff]
  %v806 = vld [vmem:[%s3 + $0x10] sm:$0xff]
  %v807 = vld [vmem:[%s3 + $0x18] sm:$0xff]
  %v808 = vld [vmem:[%s3 + $0x20] sm:$0xff]
  %v809 = vld [vmem:[%s3 + $0x28] sm:$0xff]
  %v810 = vld [vmem:[%s3 + $0x30] sm:$0xff]
  %v811 = vld [vmem:[%s3 + $0x38] sm:$0xff]
  %v812 = vld [vmem:[%s3 + $0x40] sm:$0xff]
  %v813 = vld [vmem:[%s3 + $0x48] sm:$0xff]
  %v814 = vld [vmem:[%s3 + $0x50] sm:$0xff]
  %v815 = vld [vmem:[%s3 + $0x58] sm:$0xff]
  %v816 = vld [vmem:[%s3 + $0x60] sm:$0xff]
  %v817 = vld [vmem:[%s3 + $0x68] sm:$0xff]
  %v818 = vld [vmem:[%s3 + $0x70] sm:$0xff]
  %v819 = vld [vmem:[%s3 + $0x78] sm:$0xff]
  %v820 = vld [vmem:[%s3 + $0x80] sm:$0xff]
  %v821 = vld [vmem:[%s3 + $0x88] sm:$0xff]
  %v822 = vld [vmem:[%s3 + $0x90] sm:$0xff]
  %v823 = vld [vmem:[%s3 + $0x98] sm:$0xff]
  %v824 = vld [vmem:[%s3 + $0xa0] sm:$0xff]
  %v825 = vld [vmem:[%s3 + $0xa8] sm:$0xff]
  %v826 = vld [vmem:[%s3 + $0xb0] sm:$0xff]
  %v827 = vld [vmem:[%s3 + $0xb8] sm:$0xff]
  %v828 = vld [vmem:[%s3 + $0xc0] sm:$0xff]
  %v829 = vld [vmem:[%s3 + $0xc8] sm:$0xff]
  %v830 = vld [vmem:[%s3 + $0xd0] sm:$0xff]
  %v831 = vld [vmem:[%s3 + $0xd8] sm:$0xff]
  %v832 = vld [vmem:[%s3 + $0xe0] sm:$0xff]
  %v833 = vld [vmem:[%s3 + $0xe8] sm:$0xff]
  %v834 = vld [vmem:[%s3 + $0xf0] sm:$0xff]
  %v835 = vld [vmem:[%s3 + $0xf8] sm:$0xff]
  %v836 = vld [vmem:[%s3 + $0x100] sm:$0xff]
  %v837 = vld [vmem:[%s3 + $0x108] sm:$0xff]
  %v838 = vld [vmem:[%s3 + $0x110] sm:$0xff]
  %v839 = vld [vmem:[%s3 + $0x118] sm:$0xff]
  %v840 = vld [vmem:[%s3 + $0x120] sm:$0xff]
  %v841 = vld [vmem:[%s3 + $0x128] sm:$0xff]
  %v842 = vld [vmem:[%s3 + $0x130] sm:$0xff]
  %v843 = vld [vmem:[%s3 + $0x138] sm:$0xff]
  %v844 = vld [vmem:[%s3 + $0x140] sm:$0xff]
  %v845 = vld [vmem:[%s3 + $0x148] sm:$0xff]
  %v846 = vld [vmem:[%s3 + $0x150] sm:$0xff]
  %v847 = vld [vmem:[%s3 + $0x158] sm:$0xff]
  %v848 = vld [vmem:[%s3 + $0x160] sm:$0xff]
  %v849 = vld [vmem:[%s3 + $0x168] sm:$0xff]
  %v850 = vld [vmem:[%s3 + $0x170] sm:$0xff]
  %v851 = vld [vmem:[%s3 + $0x178] sm:$0xff]
  %v852 = vld [vmem:[%s3 + $0x180] sm:$0xff]
  %v853 = vld [vmem:[%s3 + $0x188] sm:$0xff]
  %v854 = vld [vmem:[%s3 + $0x190] sm:$0xff]
  %v855 = vld [vmem:[%s3 + $0x198] sm:$0xff]
  %v856 = vld [vmem:[%s3 + $0x1a0] sm:$0xff]
  %v857 = vld [vmem:[%s3 + $0x1a8] sm:$0xff]
  %v858 = vld [vmem:[%s3 + $0x1b0] sm:$0xff]
  %v859 = vld [vmem:[%s3 + $0x1b8] sm:$0xff]
  %v860 = vld [vmem:[%s3 + $0x1c0] sm:$0xff]
  %v861 = vld [vmem:[%s3 + $0x1c8] sm:$0xff]
  %v862 = vld [vmem:[%s3 + $0x1d0] sm:$0xff]
  %v863 = vld [vmem:[%s3 + $0x1d8] sm:$0xff]
  %v864 = vld [vmem:[%s3 + $0x1e0] sm:$0xff]
  %v865 = vld [vmem:[%s3 + $0x1e8] sm:$0xff]
  %v866 = vld [vmem:[%s3 + $0x1f0] sm:$0xff]
  %v867 = vld [vmem:[%s3 + $0x1f8] sm:$0xff]
  %v868 = vld [vmem:[%s3 + $0x200] sm:$0xff]
  %v869 = vld [vmem:[%s3 + $0x208] sm:$0xff]
  %v870 = vld [vmem:[%s3 + $0x210] sm:$0xff]
  %v871 = vld [vmem:[%s3 + $0x218] sm:$0xff]
  %v872 = vld [vmem:[%s3 + $0x220] sm:$0xff]
  %v873 = vld [vmem:[%s3 + $0x228] sm:$0xff]
  %v874 = vld [vmem:[%s4] sm:$0x3]
  %v876 = vperm.slane %v874, 0
  %v877 = vperm.slane %v874, 1
  %v950 = vunpack.c.l.b16 %v804
  %v951 = vunpack.c.h.b16 %v804
  %v952 = vunpack.c.l.b16 %v805
  %v953 = vunpack.c.h.b16 %v805
  %v954 = vunpack.c.l.b16 %v806
  %v955 = vunpack.c.h.b16 %v806
  %v956 = vunpack.c.l.b16 %v807
  %v957 = vunpack.c.h.b16 %v807
  %v958 = vunpack.c.l.b16 %v808
  %v959 = vunpack.c.h.b16 %v808
  %v960 = vunpack.c.l.b16 %v809
  %v961 = vunpack.c.h.b16 %v809
  %v962 = vunpack.c.l.b16 %v810
  %v963 = vunpack.c.h.b16 %v810
  %v964 = vunpack.c.l.b16 %v811
  %v965 = vunpack.c.h.b16 %v811
  %v966 = vunpack.c.l.b16 %v812
  %v967 = vunpack.c.h.b16 %v812
  %v968 = vunpack.c.l.b16 %v813
  %v969 = vunpack.c.h.b16 %v813
  %v970 = vunpack.c.l.b16 %v814
  %v971 = vunpack.c.h.b16 %v814
  %v972 = vunpack.c.l.b16 %v815
  %v973 = vunpack.c.h.b16 %v815
  %v974 = vunpack.c.l.b16 %v816
  %v975 = vunpack.c.h.b16 %v816
  %v976 = vunpack.c.l.b16 %v817
  %v977 = vunpack.c.h.b16 %v817
  %v978 = vunpack.c.l.b16 %v818
  %v979 = vunpack.c.h.b16 %v818
  %v980 = vunpack.c.l.b16 %v819
  %v981 = vunpack.c.h.b16 %v819
  %v982 = vunpack.c.l.b16 %v820
  %v983 = vunpack.c.h.b16 %v820
  %v984 = vunpack.c.l.b16 %v821
  %v985 = vunpack.c.h.b16 %v821
  %v986 = vunpack.c.l.b16 %v822
  %v987 = vunpack.c.h.b16 %v822
  %v988 = vunpack.c.l.b16 %v823
  %v989 = vunpack.c.h.b16 %v823
  %v990 = vunpack.c.l.b16 %v824
  %v991 = vunpack.c.h.b16 %v824
  %v992 = vunpack.c.l.b16 %v825
  %v993 = vunpack.c.h.b16 %v825
  %v994 = vunpack.c.l.b16 %v826
  %v995 = vunpack.c.h.b16 %v826
  %v996 = vunpack.c.l.b16 %v827
  %v997 = vunpack.c.h.b16 %v827
  %v998 = vunpack.c.l.b16 %v828
  %v999 = vunpack.c.h.b16 %v828
  %v1000 = vunpack.c.l.b16 %v829
  %v1001 = vunpack.c.h.b16 %v829
  %v1002 = vunpack.c.l.b16 %v830
  %v1003 = vunpack.c.h.b16 %v830
  %v1004 = vunpack.c.l.b16 %v831
  %v1005 = vunpack.c.h.b16 %v831
  %v1006 = vunpack.c.l.b16 %v832
  %v1007 = vunpack.c.h.b16 %v832
  %v1008 = vunpack.c.l.b16 %v833
  %v1009 = vunpack.c.h.b16 %v833
  %v1010 = vunpack.c.l.b16 %v834
  %v1011 = vunpack.c.h.b16 %v834
  %v1012 = vunpack.c.l.b16 %v835
  %v1013 = vunpack.c.h.b16 %v835
  %v1014 = vunpack.c.l.b16 %v836
  %v1015 = vunpack.c.h.b16 %v836
  %v1016 = vunpack.c.l.b16 %v837
  %v1017 = vunpack.c.h.b16 %v837
  %v1018 = vunpack.c.l.b16 %v838
  %v1019 = vunpack.c.h.b16 %v838
  %v1020 = vunpack.c.l.b16 %v839
  %v1021 = vunpack.c.h.b16 %v839
  %v1022 = vunpack.c.l.b16 %v840
  %v1023 = vunpack.c.h.b16 %v840
  %v1024 = vunpack.c.l.b16 %v841
  %v1025 = vunpack.c.h.b16 %v841
  %v1026 = vunpack.c.l.b16 %v842
  %v1027 = vunpack.c.h.b16 %v842
  %v1028 = vunpack.c.l.b16 %v843
  %v1029 = vunpack.c.h.b16 %v843
  %v1030 = vunpack.c.l.b16 %v844
  %v1031 = vunpack.c.h.b16 %v844
  %v1032 = vunpack.c.l.b16 %v845
  %v1033 = vunpack.c.h.b16 %v845
  %v1034 = vunpack.c.l.b16 %v846
  %v1035 = vunpack.c.h.b16 %v846
  %v1036 = vunpack.c.l.b16 %v847
  %v1037 = vunpack.c.h.b16 %v847
  %v1038 = vunpack.c.l.b16 %v848
  %v1039 = vunpack.c.h.b16 %v848
  %v1040 = vunpack.c.l.b16 %v849
  %v1041 = vunpack.c.h.b16 %v849
  %v1042 = vunpack.c.l.b16 %v850
  %v1043 = vunpack.c.h.b16 %v850
  %v1044 = vunpack.c.l.b16 %v851
  %v1045 = vunpack.c.h.b16 %v851
  %v1046 = vunpack.c.l.b16 %v852
  %v1047 = vunpack.c.h.b16 %v852
  %v1048 = vunpack.c.l.b16 %v853
  %v1049 = vunpack.c.h.b16 %v853
  %v1050 = vunpack.c.l.b16 %v854
  %v1051 = vunpack.c.h.b16 %v854
  %v1052 = vunpack.c.l.b16 %v855
  %v1053 = vunpack.c.h.b16 %v855
  %v1054 = vunpack.c.l.b16 %v856
  %v1055 = vunpack.c.h.b16 %v856
  %v1056 = vunpack.c.l.b16 %v857
  %v1057 = vunpack.c.h.b16 %v857
  %v1058 = vunpack.c.l.b16 %v858
  %v1059 = vunpack.c.h.b16 %v858
  %v1060 = vunpack.c.l.b16 %v859
  %v1061 = vunpack.c.h.b16 %v859
  %v1062 = vunpack.c.l.b16 %v860
  %v1063 = vunpack.c.h.b16 %v860
  %v1064 = vunpack.c.l.b16 %v861
  %v1065 = vunpack.c.h.b16 %v861
  %v1066 = vunpack.c.l.b16 %v862
  %v1067 = vunpack.c.h.b16 %v862
  %v1068 = vunpack.c.l.b16 %v863
  %v1069 = vunpack.c.h.b16 %v863
  %v1070 = vunpack.c.l.b16 %v864
  %v1071 = vunpack.c.h.b16 %v864
  %v1072 = vunpack.c.l.b16 %v865
  %v1073 = vunpack.c.h.b16 %v865
  %v1074 = vunpack.c.l.b16 %v866
  %v1075 = vunpack.c.h.b16 %v866
  %v1076 = vunpack.c.l.b16 %v867
  %v1077 = vunpack.c.h.b16 %v867
  %v1078 = vunpack.c.l.b16 %v868
  %v1079 = vunpack.c.h.b16 %v868
  %v1080 = vunpack.c.l.b16 %v869
  %v1081 = vunpack.c.h.b16 %v869
  %v1082 = vunpack.c.l.b16 %v870
  %v1083 = vunpack.c.h.b16 %v870
  %v1084 = vunpack.c.l.b16 %v871
  %v1085 = vunpack.c.h.b16 %v871
  %v1086 = vunpack.c.l.b16 %v872
  %v1087 = vunpack.c.h.b16 %v872
  %v1088 = vunpack.c.l.b16 %v873
  %v1089 = vunpack.c.h.b16 %v873
  %v1090 = vpack.c.b16 %v952, %v950
  %v1091 = vpack.c.b16 %v953, %v951
  %v1092 = vpack.c.b16 %v956, %v954
  %v1093 = vpack.c.b16 %v957, %v955
  %v1094 = vpack.c.b16 %v960, %v958
  %v1095 = vpack.c.b16 %v961, %v959
  %v1096 = vpack.c.b16 %v964, %v962
  %v1097 = vpack.c.b16 %v965, %v963
  %v1098 = vpack.c.b16 %v968, %v966
  %v1099 = vpack.c.b16 %v969, %v967
  %v1100 = vpack.c.b16 %v972, %v970
  %v1101 = vpack.c.b16 %v973, %v971
  %v1102 = vpack.c.b16 %v976, %v974
  %v1103 = vpack.c.b16 %v977, %v975
  %v1104 = vpack.c.b16 %v980, %v978
  %v1105 = vpack.c.b16 %v981, %v979
  %v1106 = vpack.c.b16 %v984, %v982
  %v1107 = vpack.c.b16 %v985, %v983
  %v1108 = vpack.c.b16 %v988, %v986
  %v1109 = vpack.c.b16 %v989, %v987
  %v1110 = vpack.c.b16 %v992, %v990
  %v1111 = vpack.c.b16 %v993, %v991
  %v1112 = vpack.c.b16 %v996, %v994
  %v1113 = vpack.c.b16 %v997, %v995
  %v1114 = vpack.c.b16 %v1000, %v998
  %v1115 = vpack.c.b16 %v1001, %v999
  %v1116 = vpack.c.b16 %v1004, %v1002
  %v1117 = vpack.c.b16 %v1005, %v1003
  %v1118 = vpack.c.b16 %v1008, %v1006
  %v1119 = vpack.c.b16 %v1009, %v1007
  %v1120 = vpack.c.b16 %v1012, %v1010
  %v1121 = vpack.c.b16 %v1013, %v1011
  %v1122 = vpack.c.b16 %v1016, %v1014
  %v1123 = vpack.c.b16 %v1017, %v1015
  %v1124 = vpack.c.b16 %v1020, %v1018
  %v1125 = vpack.c.b16 %v1021, %v1019
  %v1126 = vpack.c.b16 %v1024, %v1022
  %v1127 = vpack.c.b16 %v1025, %v1023
  %v1128 = vpack.c.b16 %v1028, %v1026
  %v1129 = vpack.c.b16 %v1029, %v1027
  %v1130 = vpack.c.b16 %v1032, %v1030
  %v1131 = vpack.c.b16 %v1033, %v1031
  %v1132 = vpack.c.b16 %v1036, %v1034
  %v1133 = vpack.c.b16 %v1037, %v1035
  %v1134 = vpack.c.b16 %v1040, %v1038
  %v1135 = vpack.c.b16 %v1041, %v1039
  %v1136 = vpack.c.b16 %v1044, %v1042
  %v1137 = vpack.c.b16 %v1045, %v1043
  %v1138 = vpack.c.b16 %v1048, %v1046
  %v1139 = vpack.c.b16 %v1049, %v1047
  %v1140 = vpack.c.b16 %v1052, %v1050
  %v1141 = vpack.c.b16 %v1053, %v1051
  %v1142 = vpack.c.b16 %v1056, %v1054
  %v1143 = vpack.c.b16 %v1057, %v1055
  %v1144 = vpack.c.b16 %v1060, %v1058
  %v1145 = vpack.c.b16 %v1061, %v1059
  %v1146 = vpack.c.b16 %v1064, %v1062
  %v1147 = vpack.c.b16 %v1065, %v1063
  %v1148 = vpack.c.b16 %v1068, %v1066
  %v1149 = vpack.c.b16 %v1069, %v1067
  %v1150 = vpack.c.b16 %v1072, %v1070
  %v1151 = vpack.c.b16 %v1073, %v1071
  %v1152 = vpack.c.b16 %v1076, %v1074
  %v1153 = vpack.c.b16 %v1077, %v1075
  %v1154 = vpack.c.b16 %v1080, %v1078
  %v1155 = vpack.c.b16 %v1081, %v1079
  %v1156 = vpack.c.b16 %v1084, %v1082
  %v1157 = vpack.c.b16 %v1085, %v1083
  %v1158 = vpack.c.b16 %v1088, %v1086
  %v1159 = vpack.c.b16 %v1089, %v1087
  %vm1230 = vcmask 392192
  %v1232 = vsel %vm1230, %v803, 0
  %1234 = vmatpush.bf16.msra.mxu0 %v1104
  %1235 = vmatpush.bf16.msra.mxu0 %v1102
  %1236 = vmatpush.bf16.msra.mxu0 %v1100
  %1237 = vmatpush.bf16.msra.mxu0 %v1098
  %1238 = vmatpush.bf16.msra.mxu0 %v1096
  %1239 = vmatpush.bf16.msra.mxu0 %v1094
  %1240 = vmatpush.bf16.msra.mxu0 %v1092
  %1241 = vmatpush.bf16.msra.mxu0 %v1090
  %1242 = vmatmul.bf16.gmra.mxu0 %v799
  %v1243 = vpop.f32.mrf.mxu0
  %v1244 = vadd.f32 %v876, %v1243
  %v1245 = vpop.f32.mrf.mxu0
  %1246 = vdwg.mxu0
  %1247 = vmatpush.bf16.msra.mxu0 %v1120
  %1248 = vmatpush.bf16.msra.mxu0 %v1118
  %1249 = vmatpush.bf16.msra.mxu0 %v1116
  %1250 = vmatpush.bf16.msra.mxu0 %v1114
  %1251 = vmatpush.bf16.msra.mxu0 %v1112
  %1252 = vmatpush.bf16.msra.mxu0 %v1110
  %1253 = vmatpush.bf16.msra.mxu0 %v1108
  %1254 = vmatpush.bf16.msra.mxu0 %v1106
  %1255 = vmatmul.bf16.gmra.mxu0 %v800
  %v1256 = vpop.f32.mrf.mxu0
  %v1257 = vadd.f32 %v1244, %v1256
  %v1258 = vpop.f32.mrf.mxu0
  %1259 = vdwg.mxu0
  %1260 = vmatpush.bf16.msra.mxu0 %v1136
  %1261 = vmatpush.bf16.msra.mxu0 %v1134
  %1262 = vmatpush.bf16.msra.mxu0 %v1132
  %1263 = vmatpush.bf16.msra.mxu0 %v1130
  %1264 = vmatpush.bf16.msra.mxu0 %v1128
  %1265 = vmatpush.bf16.msra.mxu0 %v1126
  %1266 = vmatpush.bf16.msra.mxu0 %v1124
  %1267 = vmatpush.bf16.msra.mxu0 %v1122
  %1268 = vmatmul.bf16.gmra.mxu0 %v801
  %v1269 = vpop.f32.mrf.mxu0
  %v1270 = vadd.f32 %v1257, %v1269
  %v1271 = vpop.f32.mrf.mxu0
  %1272 = vdwg.mxu0
  %1273 = vmatpush.bf16.msra.mxu0 %v1152
  %1274 = vmatpush.bf16.msra.mxu0 %v1150
  %1275 = vmatpush.bf16.msra.mxu0 %v1148
  %1276 = vmatpush.bf16.msra.mxu0 %v1146
  %1277 = vmatpush.bf16.msra.mxu0 %v1144
  %1278 = vmatpush.bf16.msra.mxu0 %v1142
  %1279 = vmatpush.bf16.msra.mxu0 %v1140
  %1280 = vmatpush.bf16.msra.mxu0 %v1138
  %1281 = vmatmul.bf16.gmra.mxu0 %v802
  %v1282 = vpop.f32.mrf.mxu0
  %v1283 = vadd.f32 %v1270, %v1282
  %v1284 = vpop.f32.mrf.mxu0
  %1285 = vdwg.mxu0
  %1286 = vmatpush.bf16.msra.mxu0 0
  %1287 = vmatpush.bf16.msra.mxu0 0
  %1288 = vmatpush.bf16.msra.mxu0 0
  %1289 = vmatpush.bf16.msra.mxu0 0
  %1290 = vmatpush.bf16.msra.mxu0 0
  %1291 = vmatpush.bf16.msra.mxu0 %v1158
  %1292 = vmatpush.bf16.msra.mxu0 %v1156
  %1293 = vmatpush.bf16.msra.mxu0 %v1154
  %1294 = vmatmul.bf16.gmra.mxu0 %v1232
  %v1295 = vpop.f32.mrf.mxu0
  %v1296 = vadd.f32 %v1283, %v1295
  %v1297 = vpop.f32.mrf.mxu0
  %1298 = vdwg.mxu0
  %1299 = vmatpush.bf16.msra.mxu0 %v1105
  %1300 = vmatpush.bf16.msra.mxu0 %v1103
  %1301 = vmatpush.bf16.msra.mxu0 %v1101
  %1302 = vmatpush.bf16.msra.mxu0 %v1099
  %1303 = vmatpush.bf16.msra.mxu0 %v1097
  %1304 = vmatpush.bf16.msra.mxu0 %v1095
  %1305 = vmatpush.bf16.msra.mxu0 %v1093
  %1306 = vmatpush.bf16.msra.mxu0 %v1091
  %1307 = vmatmul.bf16.gmra.mxu0 %v799
  %v1308 = vpop.f32.mrf.mxu0
  %v1309 = vadd.f32 %v877, %v1308
  %v1310 = vpop.f32.mrf.mxu0
  %1311 = vdwg.mxu0
  %1312 = vmatpush.bf16.msra.mxu0 %v1121
  %1313 = vmatpush.bf16.msra.mxu0 %v1119
  %1314 = vmatpush.bf16.msra.mxu0 %v1117
  %1315 = vmatpush.bf16.msra.mxu0 %v1115
  %1316 = vmatpush.bf16.msra.mxu0 %v1113
  %1317 = vmatpush.bf16.msra.mxu0 %v1111
  %1318 = vmatpush.bf16.msra.mxu0 %v1109
  %1319 = vmatpush.bf16.msra.mxu0 %v1107
  %1320 = vmatmul.bf16.gmra.mxu0 %v800
  %v1321 = vpop.f32.mrf.mxu0
  %v1322 = vadd.f32 %v1309, %v1321
  %v1323 = vpop.f32.mrf.mxu0
  %1324 = vdwg.mxu0
  %1325 = vmatpush.bf16.msra.mxu0 %v1137
  %1326 = vmatpush.bf16.msra.mxu0 %v1135
  %1327 = vmatpush.bf16.msra.mxu0 %v1133
  %1328 = vmatpush.bf16.msra.mxu0 %v1131
  %1329 = vmatpush.bf16.msra.mxu0 %v1129
  %1330 = vmatpush.bf16.msra.mxu0 %v1127
  %1331 = vmatpush.bf16.msra.mxu0 %v1125
  %1332 = vmatpush.bf16.msra.mxu0 %v1123
  %1333 = vmatmul.bf16.gmra.mxu0 %v801
  %v1334 = vpop.f32.mrf.mxu0
  %v1335 = vadd.f32 %v1322, %v1334
  %v1336 = vpop.f32.mrf.mxu0
  %1337 = vdwg.mxu0
  %1338 = vmatpush.bf16.msra.mxu0 %v1153
  %1339 = vmatpush.bf16.msra.mxu0 %v1151
  %1340 = vmatpush.bf16.msra.mxu0 %v1149
  %1341 = vmatpush.bf16.msra.mxu0 %v1147
  %1342 = vmatpush.bf16.msra.mxu0 %v1145
  %1343 = vmatpush.bf16.msra.mxu0 %v1143
  %1344 = vmatpush.bf16.msra.mxu0 %v1141
  %1345 = vmatpush.bf16.msra.mxu0 %v1139
  %1346 = vmatmul.bf16.gmra.mxu0 %v802
  %v1347 = vpop.f32.mrf.mxu0
  %v1348 = vadd.f32 %v1335, %v1347
  %v1349 = vpop.f32.mrf.mxu0
  %1350 = vdwg.mxu0
  %1351 = vmatpush.bf16.msra.mxu0 0
  %1352 = vmatpush.bf16.msra.mxu0 0
  %1353 = vmatpush.bf16.msra.mxu0 0
  %1354 = vmatpush.bf16.msra.mxu0 0
  %1355 = vmatpush.bf16.msra.mxu0 0
  %1356 = vmatpush.bf16.msra.mxu0 %v1159
  %1357 = vmatpush.bf16.msra.mxu0 %v1157
  %1358 = vmatpush.bf16.msra.mxu0 %v1155
  %1359 = vmatmul.bf16.gmra.mxu0 %v1232
  %v1360 = vpop.f32.mrf.mxu0
  %v1361 = vadd.f32 %v1348, %v1360
  %v1362 = vpop.f32.mrf.mxu0
  %1363 = vdwg.mxu0
  %v1364 = vmax.f32 %v1296, 0.0
  %v1365 = vmax.f32 %v1361, 0.0
  %v1366 = vpack.c.bf16 %v1364, %v1364
  %v1367 = vpack.c.bf16 %v1365, %v1365
  %v1368 = vld [vmem:[%s5] sm:$0xf]
  %v1369 = vld [vmem:[%s5 + $0x4] sm:$0xf]
  %v1370 = vld [vmem:[%s5 + $0x8] sm:$0xf]
  %v1371 = vld [vmem:[%s5 + $0xc] sm:$0xf]
  %v1372 = vld [vmem:[%s5 + $0x10] sm:$0xf]
  %v1373 = vld [vmem:[%s5 + $0x14] sm:$0xf]
  %v1374 = vld [vmem:[%s5 + $0x18] sm:$0xf]
  %v1375 = vld [vmem:[%s5 + $0x1c] sm:$0xf]
  %v1376 = vld [vmem:[%s5 + $0x20] sm:$0xf]
  %v1377 = vld [vmem:[%s5 + $0x24] sm:$0xf]
  %v1378 = vld [vmem:[%s5 + $0x28] sm:$0xf]
  %v1379 = vld [vmem:[%s5 + $0x2c] sm:$0xf]
  %v1380 = vld [vmem:[%s5 + $0x30] sm:$0xf]
  %v1381 = vld [vmem:[%s5 + $0x34] sm:$0xf]
  %v1382 = vld [vmem:[%s5 + $0x38] sm:$0xf]
  %v1383 = vld [vmem:[%s5 + $0x3c] sm:$0xf]
  %v1384 = vld [vmem:[%s5 + $0x40] sm:$0xf]
  %v1385 = vld [vmem:[%s5 + $0x44] sm:$0xf]
  %v1386 = vld [vmem:[%s5 + $0x48] sm:$0xf]
  %v1387 = vld [vmem:[%s5 + $0x4c] sm:$0xf]
  %v1388 = vld [vmem:[%s5 + $0x50] sm:$0xf]
  %v1389 = vld [vmem:[%s5 + $0x54] sm:$0xf]
  %v1390 = vld [vmem:[%s5 + $0x58] sm:$0xf]
  %v1391 = vld [vmem:[%s5 + $0x5c] sm:$0xf]
  %v1392 = vld [vmem:[%s5 + $0x60] sm:$0xf]
  %v1393 = vld [vmem:[%s5 + $0x64] sm:$0xf]
  %v1394 = vld [vmem:[%s5 + $0x68] sm:$0xf]
  %v1395 = vld [vmem:[%s5 + $0x6c] sm:$0xf]
  %v1396 = vld [vmem:[%s5 + $0x70] sm:$0xf]
  %v1397 = vld [vmem:[%s5 + $0x74] sm:$0xf]
  %v1398 = vld [vmem:[%s5 + $0x78] sm:$0xf]
  %v1399 = vld [vmem:[%s5 + $0x7c] sm:$0xf]
  %v1400 = vld [vmem:[%s6] sm:$0x1]
  %v1402 = vperm.slane %v1400, 0
  %v1436 = vunpack.c.l.b16 %v1368
  %v1437 = vunpack.c.l.b16 %v1369
  %v1438 = vunpack.c.l.b16 %v1370
  %v1439 = vunpack.c.l.b16 %v1371
  %v1440 = vunpack.c.l.b16 %v1372
  %v1441 = vunpack.c.l.b16 %v1373
  %v1442 = vunpack.c.l.b16 %v1374
  %v1443 = vunpack.c.l.b16 %v1375
  %v1444 = vunpack.c.l.b16 %v1376
  %v1445 = vunpack.c.l.b16 %v1377
  %v1446 = vunpack.c.l.b16 %v1378
  %v1447 = vunpack.c.l.b16 %v1379
  %v1448 = vunpack.c.l.b16 %v1380
  %v1449 = vunpack.c.l.b16 %v1381
  %v1450 = vunpack.c.l.b16 %v1382
  %v1451 = vunpack.c.l.b16 %v1383
  %v1452 = vunpack.c.l.b16 %v1384
  %v1453 = vunpack.c.l.b16 %v1385
  %v1454 = vunpack.c.l.b16 %v1386
  %v1455 = vunpack.c.l.b16 %v1387
  %v1456 = vunpack.c.l.b16 %v1388
  %v1457 = vunpack.c.l.b16 %v1389
  %v1458 = vunpack.c.l.b16 %v1390
  %v1459 = vunpack.c.l.b16 %v1391
  %v1460 = vunpack.c.l.b16 %v1392
  %v1461 = vunpack.c.l.b16 %v1393
  %v1462 = vunpack.c.l.b16 %v1394
  %v1463 = vunpack.c.l.b16 %v1395
  %v1464 = vunpack.c.l.b16 %v1396
  %v1465 = vunpack.c.l.b16 %v1397
  %v1466 = vunpack.c.l.b16 %v1398
  %v1467 = vunpack.c.l.b16 %v1399
  %v1468 = vpack.c.b16 %v1437, %v1436
  %v1469 = vpack.c.b16 %v1439, %v1438
  %v1470 = vpack.c.b16 %v1441, %v1440
  %v1471 = vpack.c.b16 %v1443, %v1442
  %v1472 = vpack.c.b16 %v1445, %v1444
  %v1473 = vpack.c.b16 %v1447, %v1446
  %v1474 = vpack.c.b16 %v1449, %v1448
  %v1475 = vpack.c.b16 %v1451, %v1450
  %v1476 = vpack.c.b16 %v1453, %v1452
  %v1477 = vpack.c.b16 %v1455, %v1454
  %v1478 = vpack.c.b16 %v1457, %v1456
  %v1479 = vpack.c.b16 %v1459, %v1458
  %v1480 = vpack.c.b16 %v1461, %v1460
  %v1481 = vpack.c.b16 %v1463, %v1462
  %v1482 = vpack.c.b16 %v1465, %v1464
  %v1483 = vpack.c.b16 %v1467, %v1466
  %1500 = vmatpush.bf16.msra.mxu0 %v1475
  %1501 = vmatpush.bf16.msra.mxu0 %v1474
  %1502 = vmatpush.bf16.msra.mxu0 %v1473
  %1503 = vmatpush.bf16.msra.mxu0 %v1472
  %1504 = vmatpush.bf16.msra.mxu0 %v1471
  %1505 = vmatpush.bf16.msra.mxu0 %v1470
  %1506 = vmatpush.bf16.msra.mxu0 %v1469
  %1507 = vmatpush.bf16.msra.mxu0 %v1468
  %1508 = vmatmul.bf16.gmra.mxu0 %v1366
  %v1509 = vpop.f32.mrf.mxu0
  %v1510 = vadd.f32 %v1402, %v1509
  %v1511 = vpop.f32.mrf.mxu0
  %1512 = vdwg.mxu0
  %1513 = vmatpush.bf16.msra.mxu0 %v1483
  %1514 = vmatpush.bf16.msra.mxu0 %v1482
  %1515 = vmatpush.bf16.msra.mxu0 %v1481
  %1516 = vmatpush.bf16.msra.mxu0 %v1480
  %1517 = vmatpush.bf16.msra.mxu0 %v1479
  %1518 = vmatpush.bf16.msra.mxu0 %v1478
  %1519 = vmatpush.bf16.msra.mxu0 %v1477
  %1520 = vmatpush.bf16.msra.mxu0 %v1476
  %1521 = vmatmul.bf16.gmra.mxu0 %v1367
  %v1522 = vpop.f32.mrf.mxu0
  %v1523 = vadd.f32 %v1510, %v1522
  %v1524 = vpop.f32.mrf.mxu0
  %1525 = vdwg.mxu0
  %v1526 = vmax.f32 %v1523, 0.0
  %v1527 = vpack.c.bf16 %v1526, %v1526
  %v1528 = vld [vmem:[%s7] sm:$0xf]
  %v1529 = vld [vmem:[%s7 + $0x4] sm:$0xf]
  %v1530 = vld [vmem:[%s7 + $0x8] sm:$0xf]
  %v1531 = vld [vmem:[%s7 + $0xc] sm:$0xf]
  %v1532 = vld [vmem:[%s7 + $0x10] sm:$0xf]
  %v1533 = vld [vmem:[%s7 + $0x14] sm:$0xf]
  %v1534 = vld [vmem:[%s7 + $0x18] sm:$0xf]
  %v1535 = vld [vmem:[%s7 + $0x1c] sm:$0xf]
  %v1536 = vld [vmem:[%s7 + $0x20] sm:$0xf]
  %v1537 = vld [vmem:[%s7 + $0x24] sm:$0xf]
  %v1538 = vld [vmem:[%s7 + $0x28] sm:$0xf]
  %v1539 = vld [vmem:[%s7 + $0x2c] sm:$0xf]
  %v1540 = vld [vmem:[%s7 + $0x30] sm:$0xf]
  %v1541 = vld [vmem:[%s7 + $0x34] sm:$0xf]
  %v1542 = vld [vmem:[%s7 + $0x38] sm:$0xf]
  %v1543 = vld [vmem:[%s7 + $0x3c] sm:$0xf]
  %v1544 = vld [vmem:[%s8] sm:$0x1]
  %v1546 = vperm.slane %v1544, 0
  %v1564 = vunpack.c.l.b16 %v1528
  %v1565 = vunpack.c.l.b16 %v1529
  %v1566 = vunpack.c.l.b16 %v1530
  %v1567 = vunpack.c.l.b16 %v1531
  %v1568 = vunpack.c.l.b16 %v1532
  %v1569 = vunpack.c.l.b16 %v1533
  %v1570 = vunpack.c.l.b16 %v1534
  %v1571 = vunpack.c.l.b16 %v1535
  %v1572 = vunpack.c.l.b16 %v1536
  %v1573 = vunpack.c.l.b16 %v1537
  %v1574 = vunpack.c.l.b16 %v1538
  %v1575 = vunpack.c.l.b16 %v1539
  %v1576 = vunpack.c.l.b16 %v1540
  %v1577 = vunpack.c.l.b16 %v1541
  %v1578 = vunpack.c.l.b16 %v1542
  %v1579 = vunpack.c.l.b16 %v1543
  %v1580 = vpack.c.b16 %v1565, %v1564
  %v1581 = vpack.c.b16 %v1567, %v1566
  %v1582 = vpack.c.b16 %v1569, %v1568
  %v1583 = vpack.c.b16 %v1571, %v1570
  %v1584 = vpack.c.b16 %v1573, %v1572
  %v1585 = vpack.c.b16 %v1575, %v1574
  %v1586 = vpack.c.b16 %v1577, %v1576
  %v1587 = vpack.c.b16 %v1579, %v1578
  %1596 = vmatpush.bf16.msra.mxu0 %v1587
  %1597 = vmatpush.bf16.msra.mxu0 %v1586
  %1598 = vmatpush.bf16.msra.mxu0 %v1585
  %1599 = vmatpush.bf16.msra.mxu0 %v1584
  %1600 = vmatpush.bf16.msra.mxu0 %v1583
  %1601 = vmatpush.bf16.msra.mxu0 %v1582
  %1602 = vmatpush.bf16.msra.mxu0 %v1581
  %1603 = vmatpush.bf16.msra.mxu0 %v1580
  %1604 = vmatmul.bf16.gmra.mxu0 %v1527
  %v1605 = vpop.f32.mrf.mxu0
  %v1606 = vadd.f32 %v1546, %v1605
  %v1607 = vpop.f32.mrf.mxu0
  %1608 = vdwg.mxu0
  %1609 = vst [vmem:[%s9] sm:$0xff] %v1606
  // Predicated region
  $region38: #{dnn_child_forward.1} parent=0 // pred_check
    _
  $region39: #{dnn_child_forward.1} parent=0 // pred_check_branch
    %1611 = sbr.rel (0) target = $region41
  $region40: #{dnn_child_forward.1} parent=0 // pred_region
    _
  $region41: #{dnn_child_forward.1} parent=0 // pred_fallthru
    _
  // Predicated region
  $region42: #{dnn_child_forward.1} parent=0 // pred_check
    _
  $region43: #{dnn_child_forward.1} parent=0 // pred_check_branch
    %1613 = sbr.rel (0) target = $region45
  $region44: #{dnn_child_forward.1} parent=0 // pred_region
    _
  $region45: #{dnn_child_forward.1} parent=0 // pred_fallthru
    _

</llo_original>
